<compile_context>
chip_gen: v5e
topology: v5e:2x2
jax: 0.10.0
libtpu: 0.0.40
codegen_flags: <defaults>
</compile_context>

<pallas_src>
import numpy as np
import jax
import jax.numpy as jnp
from jax.experimental import pallas as pl
from jax.experimental.pallas import tpu as pltpu

WINDOW_SIZE = 11
SIGMA = 1.5
C1 = 0.01 ** 2
C2 = 0.03 ** 2


def _gaussian_1d(window_size, sigma):
    # Matches torch `gaussian(window_size, 1.5)` (normalized in f32).
    xs = np.arange(window_size)
    g = np.exp(-((xs - window_size // 2) ** 2) / (2.0 * sigma ** 2)).astype(np.float32)
    return g / g.sum()


def _band_matrix(n, g, pad):
    # M[i, j] = g[j - i + pad]  (zero outside the band), so that
    # (M @ x)[i] = sum_k g[k] * x[i + k - pad]  with x==0 out of range,
    # i.e. exactly F.conv2d(..., padding=window_size//2) along that axis.
    # Symmetric because g is symmetric about its center.
    m = np.zeros((n, n), np.float32)
    for i in range(n):
        for k in range(len(g)):
            j = i + k - pad
            if 0 <= j < n:
                m[i, j] = g[k]
    return m


def _vmem_limit_bytes():
    # Generation-aware scoped-VMEM limit: ~3/4 of physical capacity, capped.
    cap = 64 << 20  # conservative fallback (v7x physical VMEM per core)
    try:
        cap = int(getattr(pltpu.get_tpu_info(), "vmem_capacity_bytes", cap))
    except Exception:
        pass
    return int(min(cap * 3 // 4, 100 << 20))


def _pick_channels_per_step(bc, h, w, block_budget):
    # Conservative per-channel f32 footprint: double-buffered input blocks,
    # the 5-way stacked conv input, the two conv-stage outputs, elementwise
    # temporaries (~32 words/pixel), plus the per-channel share of the
    # broadcast H-band matrix (5*H*H words).
    per_ch = (32 * h * w + 5 * h * h) * 4
    # TODO(synk): a single channel exceeding the budget (huge H*W) would need
    # spatial row-band tiling with a 2*pad halo; not implemented.
    n = int(max(1, min(bc, block_budget // per_ch)))
    # Keep >= 2 parallel grid steps when possible (v7x dual TensorCore).
    if bc > 1:
        n = min(n, -(-bc // 2))
    return n


def _make_kernel(n_per_step, H, W, BC, BC_pad):
    C5 = 5 * n_per_step
    NH = n_per_step * H

    def kernel(gh_ref, gw_ref, x1_ref, x2_ref, o_ref):
        x1 = x1_ref[...].astype(jnp.float32)          # (n, H, W)
        x2 = x2_ref[...].astype(jnp.float32)

        # One Gaussian-blur pass over all five stacked conv inputs.
        stacked = jnp.concatenate(
            [x1, x2, x1 * x1, x2 * x2, x1 * x2], axis=0)    # (5n, H, W)

        # H blur: batched band-matrix matmul on the MXU (GH broadcast once;
        # hoisted because JAX does not CSE broadcast_in_dim).
        gh_b = jnp.broadcast_to(gh_ref[...], (C5, H, H))
        th = jnp.einsum('nuh,nhw->nuw', gh_b, stacked,
                        preferred_element_type=jnp.float32)  # (5n, H, W)

        # W blur: one 2D MXU matmul with M = 5*n*H (leading-dim collapse only).
        tw = jnp.dot(th.reshape(C5 * H, W), gw_ref[...],
                     preferred_element_type=jnp.float32)     # (5n*H, W)

        mu1 = tw[0 * NH:1 * NH]
        mu2 = tw[1 * NH:2 * NH]
        e11 = tw[2 * NH:3 * NH]
        e22 = tw[3 * NH:4 * NH]
        e12 = tw[4 * NH:5 * NH]

        mu1_sq = mu1 * mu1
        mu2_sq = mu2 * mu2
        mu1_mu2 = mu1 * mu2
        sigma1_sq = e11 - mu1_sq
        sigma2_sq = e22 - mu2_sq
        sigma12 = e12 - mu1_mu2

        numer = (2.0 * mu1_mu2 + C1) * (2.0 * sigma12 + C2)
        denom = (mu1_sq + mu2_sq + C1) * (sigma1_sq + sigma2_sq + C2)
        # EUP approximate reciprocal + one Newton step (~1e-7 rel. error).
        r = pl.reciprocal(denom, approx=True)
        r = r * (2.0 - denom * r)
        ssim_map = numer * r                                 # (n*H, W)

        if BC_pad != BC:
            # Mask the zero-padded channels of the last (partial) block.
            valid = jnp.minimum(n_per_step,
                                BC - pl.program_id(0) * n_per_step)
            rows = jax.lax.broadcasted_iota(jnp.int32, (NH, W), 0)
            ssim_map = jnp.where(rows < valid * H, ssim_map, 0.0)

        # Lane-dense per-step partial sum (reduced + normalized in wrapper).
        o_ref[...] = jnp.full(o_ref.shape, jnp.sum(ssim_map), dtype=o_ref.dtype)

    return kernel


def ssim(img1, img2, window_size=WINDOW_SIZE, size_average=True):
    """Pallas SSIM; img1/img2 are NCHW, returns scalar mean SSIM (f32)."""
    # TODO(synk): size_average=False (per-image mean) path not implemented.
    assert size_average, "only size_average=True (module default) is supported"
    B, C, H, W = img1.shape
    pad = window_size // 2
    g = _gaussian_1d(window_size, SIGMA)
    gh = jnp.asarray(_band_matrix(H, g, pad))   # (H, H) band operator
    gw = jnp.asarray(_band_matrix(W, g, pad))   # (W, W) band operator (symmetric)

    BC = B * C
    # Keep the native dtype; cast to f32 inside the kernel (no extra HBM pass).
    x1 = img1.reshape(BC, H, W)
    x2 = img2.reshape(BC, H, W)

    vmem_limit = _vmem_limit_bytes()
    block_budget = max(vmem_limit // 2 - (2 << 20), 1 << 20)
    n_per_step = _pick_channels_per_step(BC, H, W, block_budget)
    num_steps = -(-BC // n_per_step)
    BC_pad = num_steps * n_per_step
    if BC_pad != BC:
        z = jnp.zeros((BC_pad - BC, H, W), x1.dtype)
        x1 = jnp.concatenate([x1, z], axis=0)
        x2 = jnp.concatenate([x2, z], axis=0)

    out = pl.pallas_call(
        _make_kernel(n_per_step, H, W, BC, BC_pad),
        out_shape=jax.ShapeDtypeStruct((num_steps, 8, 128), jnp.float32),
        grid_spec=pltpu.PrefetchScalarGridSpec(
            num_scalar_prefetch=0,
            grid=(num_steps,),
            in_specs=[
                pl.BlockSpec((H, H), lambda i: (0, 0)),              # GH (resident)
                pl.BlockSpec((W, W), lambda i: (0, 0)),              # GW (resident)
                pl.BlockSpec((n_per_step, H, W), lambda i: (i, 0, 0)),
                pl.BlockSpec((n_per_step, H, W), lambda i: (i, 0, 0)),
            ],
            out_specs=pl.BlockSpec((1, 8, 128), lambda i: (i, 0, 0)),
        ),
        compiler_params=pltpu.CompilerParams(
            dimension_semantics=("parallel",),
            vmem_limit_bytes=vmem_limit),
    )(gh, gw, x1, x2)

    return jnp.sum(out[:, 0, 0]) / float(BC * H * W)


def _ssim_reference(img1, img2, window_size=WINDOW_SIZE):
    # Pure-JAX reference mirroring the PyTorch module (depthwise conv2d).
    B, C, H, W = img1.shape
    pad = window_size // 2
    g = _gaussian_1d(window_size, SIGMA)
    w2d = np.outer(g, g).astype(np.float32)
    window = jnp.asarray(np.broadcast_to(w2d, (C, 1, window_size, window_size)).copy())

    def conv(x):
        return jax.lax.conv_general_dilated(
            x, window, window_strides=(1, 1),
            padding=[(pad, pad), (pad, pad)],
            dimension_numbers=('NCHW', 'OIHW', 'NCHW'),
            feature_group_count=C)

    x1 = img1.astype(jnp.float32)
    x2 = img2.astype(jnp.float32)
    mu1, mu2 = conv(x1), conv(x2)
    mu1_sq, mu2_sq, mu1_mu2 = mu1 * mu1, mu2 * mu2, mu1 * mu2
    s1 = conv(x1 * x1) - mu1_sq
    s2 = conv(x2 * x2) - mu2_sq
    s12 = conv(x1 * x2) - mu1_mu2
    m = (2 * mu1_mu2 + C1) * (2 * s12 + C2) / ((mu1_sq + mu2_sq + C1) * (s1 + s2 + C2))
    return jnp.mean(m)


if __name__ == "__main__":
    key = jax.random.PRNGKey(0)
    k1, k2 = jax.random.split(key)
    # NCHW, small shapes: batch=2, channels=4, spatial=16
    img1 = jax.random.uniform(k1, (2, 4, 16, 16), dtype=jnp.float32)
    img2 = jax.random.uniform(k2, (2, 4, 16, 16), dtype=jnp.float32)

    result = ssim(img1, img2)
    jax.block_until_ready(result)

    ref = _ssim_reference(img1, img2)
    np.testing.assert_allclose(np.asarray(result), np.asarray(ref),
                               rtol=1e-4, atol=1e-4)
    print("KERNEL_OK")
</pallas_src>

<mosaic_0001>
module attributes {stable_mosaic.version = 11 : i64} {
  func.func @kernel(%arg0: i32, %arg1: memref<16x16xf32, #tpu.memory_space<vmem>>, %arg2: memref<16x16xf32, #tpu.memory_space<vmem>>, %arg3: memref<4x16x16xf32, #tpu.memory_space<vmem>>, %arg4: memref<4x16x16xf32, #tpu.memory_space<vmem>>, %arg5: memref<1x8x128xf32, #tpu.memory_space<vmem>>) attributes {dimension_semantics = [#tpu.dimension_semantics<parallel>], iteration_bounds = array<i64: 2>, scalar_prefetch = 0 : i64, scratch_operands = 0 : i64, tpu.core_type = #tpu.core_type<tc>, window_params = [{pipeline_mode = #tpu.pipeline_mode<synchronous>, transform_indices = @transform_0, window_bounds = array<i64: 16, 16>}, {pipeline_mode = #tpu.pipeline_mode<synchronous>, transform_indices = @transform_1, window_bounds = array<i64: 16, 16>}, {transform_indices = @transform_2, window_bounds = array<i64: 4, 16, 16>}, {transform_indices = @transform_3, window_bounds = array<i64: 4, 16, 16>}, {transform_indices = @transform_4, window_bounds = array<i64: 1, 8, 128>}]} {
    %c0 = arith.constant 0 : index
    %c0_0 = arith.constant 0 : index
    %c0_1 = arith.constant 0 : index
    %0 = vector.load %arg3[%c0, %c0_0, %c0_1] : memref<4x16x16xf32, #tpu.memory_space<vmem>>, vector<4x16x16xf32>
    %c0_2 = arith.constant 0 : index
    %c0_3 = arith.constant 0 : index
    %c0_4 = arith.constant 0 : index
    %1 = vector.load %arg4[%c0_2, %c0_3, %c0_4] : memref<4x16x16xf32, #tpu.memory_space<vmem>>, vector<4x16x16xf32>
    %2 = arith.mulf %0, %0 : vector<4x16x16xf32>
    %3 = arith.mulf %1, %1 : vector<4x16x16xf32>
    %4 = arith.mulf %0, %1 : vector<4x16x16xf32>
    %5 = tpu.concatenate %0, %1, %2, %3, %4 in 0 : vector<4x16x16xf32>, vector<4x16x16xf32>, vector<4x16x16xf32>, vector<4x16x16xf32>, vector<4x16x16xf32> -> vector<20x16x16xf32>
    %c0_5 = arith.constant 0 : index
    %c0_6 = arith.constant 0 : index
    %6 = vector.load %arg1[%c0_5, %c0_6] : memref<16x16xf32, #tpu.memory_space<vmem>>, vector<16x16xf32>
    %7 = vector.shape_cast %6 : vector<16x16xf32> to vector<1x16x16xf32>
    %8 = vector.broadcast %7 : vector<1x16x16xf32> to vector<20x16x16xf32>
    "tpu.trace_start"() <{level = 10 : i32, message = "nuh,nhw->nuw"}> : () -> ()
    %cst = arith.constant dense<0.000000e+00> : vector<20x16x16xf32>
    %9 = tpu.matmul %8, %5, %cst {dimension_numbers = #tpu.dot_dimension_numbers<[2], [1], [1], [2], [0, 0, 0, 1, 1, 2], [0], [0]>} : vector<20x16x16xf32>, vector<20x16x16xf32>, vector<20x16x16xf32> -> vector<20x16x16xf32>
    "tpu.trace_stop"() : () -> ()
    %10 = vector.shape_cast %9 : vector<20x16x16xf32> to vector<320x16xf32>
    %c0_7 = arith.constant 0 : index
    %c0_8 = arith.constant 0 : index
    %11 = vector.load %arg2[%c0_7, %c0_8] : memref<16x16xf32, #tpu.memory_space<vmem>>, vector<16x16xf32>
    %cst_9 = arith.constant dense<0.000000e+00> : vector<320x16xf32>
    %12 = tpu.matmul %10, %11, %cst_9 {dimension_numbers = #tpu.dot_dimension_numbers<[1], [0], [0], [1], [0, 0, 1, 1], [], []>} : vector<320x16xf32>, vector<16x16xf32>, vector<320x16xf32> -> vector<320x16xf32>
    %13 = vector.extract_strided_slice %12 {offsets = [0, 0], sizes = [64, 16], strides = [1, 1]} : vector<320x16xf32> to vector<64x16xf32>
    %14 = vector.extract_strided_slice %12 {offsets = [64, 0], sizes = [64, 16], strides = [1, 1]} : vector<320x16xf32> to vector<64x16xf32>
    %15 = vector.extract_strided_slice %12 {offsets = [128, 0], sizes = [64, 16], strides = [1, 1]} : vector<320x16xf32> to vector<64x16xf32>
    %16 = vector.extract_strided_slice %12 {offsets = [192, 0], sizes = [64, 16], strides = [1, 1]} : vector<320x16xf32> to vector<64x16xf32>
    %17 = vector.extract_strided_slice %12 {offsets = [256, 0], sizes = [64, 16], strides = [1, 1]} : vector<320x16xf32> to vector<64x16xf32>
    %18 = arith.mulf %13, %13 : vector<64x16xf32>
    %19 = arith.mulf %14, %14 : vector<64x16xf32>
    %20 = arith.mulf %13, %14 : vector<64x16xf32>
    %21 = arith.subf %15, %18 : vector<64x16xf32>
    %22 = arith.subf %16, %19 : vector<64x16xf32>
    %23 = arith.subf %17, %20 : vector<64x16xf32>
    %cst_10 = arith.constant 2.000000e+00 : f32
    %24 = vector.broadcast %cst_10 : f32 to vector<64x16xf32>
    %25 = arith.mulf %24, %20 : vector<64x16xf32>
    %cst_11 = arith.constant 9.99999974E-5 : f32
    %26 = vector.broadcast %cst_11 : f32 to vector<64x16xf32>
    %27 = arith.addf %25, %26 : vector<64x16xf32>
    %cst_12 = arith.constant 2.000000e+00 : f32
    %28 = vector.broadcast %cst_12 : f32 to vector<64x16xf32>
    %29 = arith.mulf %28, %23 : vector<64x16xf32>
    %cst_13 = arith.constant 8.99999984E-4 : f32
    %30 = vector.broadcast %cst_13 : f32 to vector<64x16xf32>
    %31 = arith.addf %29, %30 : vector<64x16xf32>
    %32 = arith.mulf %27, %31 : vector<64x16xf32>
    %33 = arith.addf %18, %19 : vector<64x16xf32>
    %cst_14 = arith.constant 9.99999974E-5 : f32
    %34 = vector.broadcast %cst_14 : f32 to vector<64x16xf32>
    %35 = arith.addf %33, %34 : vector<64x16xf32>
    %36 = arith.addf %21, %22 : vector<64x16xf32>
    %cst_15 = arith.constant 8.99999984E-4 : f32
    %37 = vector.broadcast %cst_15 : f32 to vector<64x16xf32>
    %38 = arith.addf %36, %37 : vector<64x16xf32>
    %39 = arith.mulf %35, %38 : vector<64x16xf32>
    %40 = tpu.reciprocal %39 {approx = true} : vector<64x16xf32> -> vector<64x16xf32>
    %41 = arith.mulf %39, %40 : vector<64x16xf32>
    %cst_16 = arith.constant 2.000000e+00 : f32
    %42 = vector.broadcast %cst_16 : f32 to vector<64x16xf32>
    %43 = arith.subf %42, %41 : vector<64x16xf32>
    %44 = arith.mulf %40, %43 : vector<64x16xf32>
    %45 = arith.mulf %32, %44 : vector<64x16xf32>
    %46 = vector.shape_cast %45 : vector<64x16xf32> to vector<1x64x16xf32>
    %cst_17 = arith.constant dense<0.000000e+00> : vector<1xf32>
    %47 = vector.multi_reduction <add>, %46, %cst_17 [1, 2] : vector<1x64x16xf32> to vector<1xf32>
    %48 = vector.shape_cast %47 : vector<1xf32> to vector<1x1x1xf32>
    %49 = vector.extract %48[0, 0, 0] : f32 from vector<1x1x1xf32>
    %50 = vector.broadcast %49 : f32 to vector<1x8x128xf32>
    %c0_18 = arith.constant 0 : index
    %c0_19 = arith.constant 0 : index
    %c0_20 = arith.constant 0 : index
    %51 = vector.load %arg5[%c0_18, %c0_19, %c0_20] : memref<1x8x128xf32, #tpu.memory_space<vmem>>, vector<1x8x128xf32>
    tpu.vector_store %arg5[%c0_18, %c0_19, %c0_20], %50 {strides = array<i32>} : memref<1x8x128xf32, #tpu.memory_space<vmem>>, vector<1x8x128xf32>,
    return
  }
  func.func @transform_0(%arg0: i32) -> (i32, i32) {
    %c0_i32 = arith.constant 0 : i32
    %c0_i32_0 = arith.constant 0 : i32
    %c0_i32_1 = arith.constant 0 : i32
    return %c0_i32, %c0_i32_0 : i32, i32
  }
  func.func @transform_1(%arg0: i32) -> (i32, i32) {
    %c0_i32 = arith.constant 0 : i32
    %c0_i32_0 = arith.constant 0 : i32
    %c0_i32_1 = arith.constant 0 : i32
    return %c0_i32, %c0_i32_0 : i32, i32
  }
  func.func @transform_2(%arg0: i32) -> (i32, i32, i32) {
    %c0_i32 = arith.constant 0 : i32
    %c0_i32_0 = arith.constant 0 : i32
    %c0_i32_1 = arith.constant 0 : i32
    return %arg0, %c0_i32, %c0_i32_0 : i32, i32, i32
  }
  func.func @transform_3(%arg0: i32) -> (i32, i32, i32) {
    %c0_i32 = arith.constant 0 : i32
    %c0_i32_0 = arith.constant 0 : i32
    %c0_i32_1 = arith.constant 0 : i32
    return %arg0, %c0_i32, %c0_i32_0 : i32, i32, i32
  }
  func.func @transform_4(%arg0: i32) -> (i32, i32, i32) {
    %c0_i32 = arith.constant 0 : i32
    %c0_i32_0 = arith.constant 0 : i32
    %c0_i32_1 = arith.constant 0 : i32
    return %arg0, %c0_i32, %c0_i32_0 : i32, i32, i32
  }
}

</mosaic_0001>

<llo_original>
// kernel: tpu_custom_call.1
$region0: #{tpu_custom_call.1}
  #allocation0 [shape = 'u32[]', space=smem, size = 0x4, offset = 0x4, fixed_abs, tag = 'smem constant byte address 0x4 - core index']
  #allocation1 [shape = 'u32[72,128]{1,0:T(1,128)}', space=vmem, size = 0x9000, scoped, tag = 'internal scratch']
  %s0 = inlined_call_operand.hbm [shape: f32[16,16], index: 0, kind: input, shape index: {}]
  %s1 = inlined_call_operand.hbm [shape: f32[16,16], index: 1, kind: input, shape index: {}]
  %s2 = inlined_call_operand.hbm [shape: f32[8,16,16], index: 2, kind: input, shape index: {}]
  %s3 = inlined_call_operand.hbm [shape: f32[8,16,16], index: 3, kind: input, shape index: {}]
  %s4 = inlined_call_operand.hbm [shape: f32[2,8,128], index: 4, kind: output, shape index: {}]
  %s5 = sld [smem:[#allocation0]]
  $region65: #{tpu_custom_call.1} parent=0
    _
  %s7 = ssub.s32 1, %s5
  %s8 = scalar_select 0, %s7, %s5
  $region1: #{tpu_custom_call.1} parent=0
    #allocation2 [shape = 'u8[8192]{0}', space=vmem, size = 0x2000, scoped, tag = 'input window, operand 0, single buffered']
    #allocation3 [shape = 's32[2]{0}', space=sflag, size = 0x8, scoped, tag = 'scoped memory for tpu_custom_call.1']
    #allocation4 [shape = 's32[2]{0}', space=sflag, size = 0x8, scoped, tag = 'scoped memory for tpu_custom_call.1']
    #allocation5 [shape = 'u8[8192]{0}', space=vmem, size = 0x2000, scoped, tag = 'input window, operand 1, single buffered']
    #allocation6 [shape = 's32[1]{0}', space=sflag, size = 0x4, scoped, tag = 'scoped memory for tpu_custom_call.1']
    #allocation7 [shape = 'u8[65536]{0}', space=vmem, size = 0x10000, scoped, tag = 'input window, operand 2']
    #allocation8 [shape = 'u8[65536]{0}', space=vmem, size = 0x10000, scoped, tag = 'input window, operand 3']
    #allocation9 [shape = 'u8[8192]{0}', space=vmem, size = 0x2000, scoped, tag = 'output window, operand 0']
    %9 = vsyncpa [#allocation3], 0
    %10 = vsyncpa [#allocation6], 0
    %11 = vsyncpa [#allocation4], 0
    %s12 = scalar_lea.sflag [#allocation4], 1
    %13 = vsyncpa %s12, 0
    loop: start=0, step=1, limit=4
    $region2: #{tpu_custom_call.1} parent=1 // loop_pre_header
      _
    $region3: #{tpu_custom_call.1} parent=1 // loop_header
      %s15 = sphi 0, %s19
      %p16 = scmp.ge.s32.totalorder %s15, 4
      %s23 = sphi 0, %s23
      %s25 = sphi 0, %s23
      %s26 = sphi 0, %s25
      %s40 = sphi 0, %s26
      %s44 = sphi 0, %s44
      %s46 = sphi 0, %s44
      %s47 = sphi 0, %s46
      %s61 = sphi 0, %s47
      %s67 = sphi 0, %s69
      %s70 = sphi 0, %s67
      %s71 = sphi 0, %s70
      %s87 = sphi 0, %s71
      %s93 = sphi 0, %s95
      %s96 = sphi 0, %s93
      %s97 = sphi 0, %s96
      %s113 = sphi 0, %s97
      %s119 = sphi 0, %s121
      %s122 = sphi 0, %s119
      %s123 = sphi 0, %s122
      %s139 = sphi 0, %s123
    $region4: #{tpu_custom_call.1} parent=1 // loop_header_branch
      %18 = sbr.rel (%p16) target = $region8
    $region5: #{tpu_custom_call.1} parent=1 // loop_body
      %s20 = ssub.s32 %s15, 1
      %s21 = ssub.s32 %s15, 2
      %s22 = sadd.s32 %s15, 1
      %s24 = sadd.s32 %s23, 1
      %p27 = scmp.eq.s32.totalorder %s15, 1
      %p28 = scmp.ne.s32.totalorder %s23, %s25
      %p29 = scmp.eq.s32.totalorder %s15, 0
      %p30 = por %p28, %p29
      %p31 = scmp.ne.s32.totalorder %s23, %s25
      %p32 = scmp.eq.s32.totalorder %s20, 1
      %p33 = por %p31, %p32
      %p34 = scmp.ne.s32.totalorder %s25, %s26
      %p35 = scmp.eq.s32.totalorder %s20, 0
      %p36 = por %p34, %p35
      %p37 = scmp.ne.s32.totalorder %s25, %s26
      %p38 = scmp.eq.s32.totalorder %s21, 1
      %p39 = por %p37, %p38
      %p41 = scmp.ne.s32.totalorder %s26, %s40
      %p42 = scmp.eq.s32.totalorder %s21, 0
      %p43 = por %p41, %p42
      %s45 = sadd.s32 %s44, 1
      %p48 = scmp.eq.s32.totalorder %s15, 1
      %p49 = scmp.ne.s32.totalorder %s44, %s46
      %p50 = scmp.eq.s32.totalorder %s15, 0
      %p51 = por %p49, %p50
      %p52 = scmp.ne.s32.totalorder %s44, %s46
      %p53 = scmp.eq.s32.totalorder %s20, 1
      %p54 = por %p52, %p53
      %p55 = scmp.ne.s32.totalorder %s46, %s47
      %p56 = scmp.eq.s32.totalorder %s20, 0
      %p57 = por %p55, %p56
      %p58 = scmp.ne.s32.totalorder %s46, %s47
      %p59 = scmp.eq.s32.totalorder %s21, 1
      %p60 = por %p58, %p59
      %p62 = scmp.ne.s32.totalorder %s47, %s61
      %p63 = scmp.eq.s32.totalorder %s21, 0
      %p64 = por %p62, %p63
      %s65 = ssub.s32 %s15, %s22
      %p66 = scmp.eq.s32.totalorder %s65, 0
      %s68 = sadd.s32 %s67, 1
      %s69 = scalar_select %p66, %s67, %s68
      %p72 = pneg %p66
      %p73 = scmp.eq.s32.totalorder %s15, 1
      %p74 = por %p72, %p73
      %p75 = scmp.ne.s32.totalorder %s67, %s70
      %p76 = scmp.eq.s32.totalorder %s15, 0
      %p77 = por %p75, %p76
      %p78 = scmp.ne.s32.totalorder %s67, %s70
      %p79 = scmp.eq.s32.totalorder %s20, 1
      %p80 = por %p78, %p79
      %p81 = scmp.ne.s32.totalorder %s70, %s71
      %p82 = scmp.eq.s32.totalorder %s20, 0
      %p83 = por %p81, %p82
      %p84 = scmp.ne.s32.totalorder %s70, %s71
      %p85 = scmp.eq.s32.totalorder %s21, 1
      %p86 = por %p84, %p85
      %p88 = scmp.ne.s32.totalorder %s71, %s87
      %p89 = scmp.eq.s32.totalorder %s21, 0
      %p90 = por %p88, %p89
      %s91 = ssub.s32 %s15, %s22
      %p92 = scmp.eq.s32.totalorder %s91, 0
      %s94 = sadd.s32 %s93, 1
      %s95 = scalar_select %p92, %s93, %s94
      %p98 = pneg %p92
      %p99 = scmp.eq.s32.totalorder %s15, 1
      %p100 = por %p98, %p99
      %p101 = scmp.ne.s32.totalorder %s93, %s96
      %p102 = scmp.eq.s32.totalorder %s15, 0
      %p103 = por %p101, %p102
      %p104 = scmp.ne.s32.totalorder %s93, %s96
      %p105 = scmp.eq.s32.totalorder %s20, 1
      %p106 = por %p104, %p105
      %p107 = scmp.ne.s32.totalorder %s96, %s97
      %p108 = scmp.eq.s32.totalorder %s20, 0
      %p109 = por %p107, %p108
      %p110 = scmp.ne.s32.totalorder %s96, %s97
      %p111 = scmp.eq.s32.totalorder %s21, 1
      %p112 = por %p110, %p111
      %p114 = scmp.ne.s32.totalorder %s97, %s113
      %p115 = scmp.eq.s32.totalorder %s21, 0
      %p116 = por %p114, %p115
      %s117 = ssub.s32 %s15, %s22
      %p118 = scmp.eq.s32.totalorder %s117, 0
      %s120 = sadd.s32 %s119, 1
      %s121 = scalar_select %p118, %s119, %s120
      %p124 = pneg %p118
      %p125 = scmp.eq.s32.totalorder %s15, 1
      %p126 = por %p124, %p125
      %p127 = scmp.ne.s32.totalorder %s119, %s122
      %p128 = scmp.eq.s32.totalorder %s15, 0
      %p129 = por %p127, %p128
      %p130 = scmp.ne.s32.totalorder %s119, %s122
      %p131 = scmp.eq.s32.totalorder %s20, 1
      %p132 = por %p130, %p131
      %p133 = scmp.ne.s32.totalorder %s122, %s123
      %p134 = scmp.eq.s32.totalorder %s20, 0
      %p135 = por %p133, %p134
      %p136 = scmp.ne.s32.totalorder %s122, %s123
      %p137 = scmp.eq.s32.totalorder %s21, 1
      %p138 = por %p136, %p137
      %p140 = scmp.ne.s32.totalorder %s123, %s139
      %p141 = scmp.eq.s32.totalorder %s21, 0
      %p142 = por %p140, %p141
      %p143 = scmp.le.s32.totalorder 1, %s15
      %p144 = scmp.lt.s32.totalorder %s15, 3
      %p145 = pnand %p143, %p144
      %p146 = pneg %p145
      // Predicated region
      $region9: #{tpu_custom_call.1} parent=5 // pred_check
        _
      $region10: #{tpu_custom_call.1} parent=5 // pred_check_branch
        %148 = sbr.rel (%p145) target = $region12
      $region11: #{tpu_custom_call.1} parent=5 // pred_region
        %s149 = ssub.s32 %s15, 1
        // Predicated region
        $region13: #{tpu_custom_call.1} parent=11 // pred_check
          %p150 = pneg %p36
        $region14: #{tpu_custom_call.1} parent=11 // pred_check_branch
          %152 = sbr.rel (%p150) target = $region16
        $region15: #{tpu_custom_call.1} parent=11 // pred_region
          %154 = vsyncadd [#allocation3], 0
          %s155 = sshll.u32 %s0, 4
          %s156 = int_to_ptr.hbm [resolvable:$true] %s155
          %s157 = sshll.u32 [#allocation2], 4
          %s158 = int_to_ptr.vmem [resolvable:$true] %s157
          %163 = dma.hbm_to_vmem [thread:$0]  %s156, 256, %s158, [#allocation3], 128, 128, 8
        $region16: #{tpu_custom_call.1} parent=11 // pred_fallthru
          _
        // Predicated region
        $region17: #{tpu_custom_call.1} parent=11 // pred_check
          %p164 = pneg %p57
        $region18: #{tpu_custom_call.1} parent=11 // pred_check_branch
          %166 = sbr.rel (%p164) target = $region20
        $region19: #{tpu_custom_call.1} parent=11 // pred_region
          %168 = vsyncadd [#allocation6], 0
          %s169 = sshll.u32 %s1, 4
          %s170 = int_to_ptr.hbm [resolvable:$true] %s169
          %s171 = sshll.u32 [#allocation5], 4
          %s172 = int_to_ptr.vmem [resolvable:$true] %s171
          %177 = dma.hbm_to_vmem [thread:$0]  %s170, 256, %s172, [#allocation6], 128, 128, 8
        $region20: #{tpu_custom_call.1} parent=11 // pred_fallthru
          _
      $region12: #{tpu_custom_call.1} parent=5 // pred_fallthru
        _
      %p178 = scmp.lt.s32.totalorder %s15, 2
      // Predicated region
      $region21: #{tpu_custom_call.1} parent=5 // pred_check
        %p179 = pneg %p178
      $region22: #{tpu_custom_call.1} parent=5 // pred_check_branch
        %181 = sbr.rel (%p179) target = $region24
      $region23: #{tpu_custom_call.1} parent=5 // pred_region
        // Predicated region
        $region25: #{tpu_custom_call.1} parent=23 // pred_check
          %p182 = pneg %p77
        $region26: #{tpu_custom_call.1} parent=23 // pred_check_branch
          %184 = sbr.rel (%p182) target = $region28
        $region27: #{tpu_custom_call.1} parent=23 // pred_region
          %s185 = sand.u32 %s15, 1
          %s186 = scalar_lea.sflag [#allocation3], %s185
          %s187 = sand.u32 %s67, 1
          %s188 = smul.addr %s187, 64
          %s189 = scalar_lea.vmem [#allocation7], %s188
          %s190 = smul.u32 4, %s15
          %192 = vsyncadd %s186, 0
          %s193 = smul.addr %s190, 2
          %s194 = smul.addr %s193, 8
          %s195 = scalar_lea.hbm %s2, %s194
          %s196 = sshll.u32 %s195, 4
          %s197 = int_to_ptr.hbm [resolvable:$true] %s196
          %s198 = sshll.u32 %s189, 4
          %s199 = int_to_ptr.vmem [resolvable:$true] %s198
          %204 = dma.hbm_to_vmem [thread:$0]  %s197, 1024, %s199, %s186, 128, 128, 8
        $region28: #{tpu_custom_call.1} parent=23 // pred_fallthru
          _
        // Predicated region
        $region29: #{tpu_custom_call.1} parent=23 // pred_check
          %p205 = pneg %p103
        $region30: #{tpu_custom_call.1} parent=23 // pred_check_branch
          %207 = sbr.rel (%p205) target = $region32
        $region31: #{tpu_custom_call.1} parent=23 // pred_region
          %s208 = sand.u32 %s15, 1
          %s209 = scalar_lea.sflag [#allocation3], %s208
          %s210 = sand.u32 %s93, 1
          %s211 = smul.addr %s210, 64
          %s212 = scalar_lea.vmem [#allocation8], %s211
          %s213 = smul.u32 4, %s15
          %215 = vsyncadd %s209, 0
          %s216 = smul.addr %s213, 2
          %s217 = smul.addr %s216, 8
          %s218 = scalar_lea.hbm %s3, %s217
          %s219 = sshll.u32 %s218, 4
          %s220 = int_to_ptr.hbm [resolvable:$true] %s219
          %s221 = sshll.u32 %s212, 4
          %s222 = int_to_ptr.vmem [resolvable:$true] %s221
          %227 = dma.hbm_to_vmem [thread:$0]  %s220, 1024, %s222, %s209, 128, 128, 8
        $region32: #{tpu_custom_call.1} parent=23 // pred_fallthru
          _
      $region24: #{tpu_custom_call.1} parent=5 // pred_fallthru
        _
      %p228 = scmp.le.s32.totalorder 1, %s15
      %p229 = scmp.lt.s32.totalorder %s15, 3
      %p230 = pnand %p228, %p229
      %p231 = pneg %p230
      // Predicated region
      $region33: #{tpu_custom_call.1} parent=5 // pred_check
        _
      $region34: #{tpu_custom_call.1} parent=5 // pred_check_branch
        %233 = sbr.rel (%p230) target = $region36
      $region35: #{tpu_custom_call.1} parent=5 // pred_region
        %s234 = ssub.s32 %s15, 1
        // Predicated region
        $region37: #{tpu_custom_call.1} parent=35 // pred_check
          %p235 = pneg %p36
        $region38: #{tpu_custom_call.1} parent=35 // pred_check_branch
          %237 = sbr.rel (%p235) target = $region40
        $region39: #{tpu_custom_call.1} parent=35 // pred_region
          %239 = dma.done [#allocation3], 256
        $region40: #{tpu_custom_call.1} parent=35 // pred_fallthru
          _
        // Predicated region
        $region41: #{tpu_custom_call.1} parent=35 // pred_check
          %p240 = pneg %p57
        $region42: #{tpu_custom_call.1} parent=35 // pred_check_branch
          %242 = sbr.rel (%p240) target = $region44
        $region43: #{tpu_custom_call.1} parent=35 // pred_region
          %244 = dma.done [#allocation6], 256
        $region44: #{tpu_custom_call.1} parent=35 // pred_fallthru
          _
        %s245 = sand.u32 %s20, 1
        %s246 = scalar_lea.sflag [#allocation3], %s245
        %s247 = sand.u32 %s70, 1
        %s248 = smul.addr %s247, 64
        %s249 = scalar_lea.vmem [#allocation7], %s248
        // Predicated region
        $region45: #{tpu_custom_call.1} parent=35 // pred_check
          %p250 = pneg %p83
        $region46: #{tpu_custom_call.1} parent=35 // pred_check_branch
          %252 = sbr.rel (%p250) target = $region48
        $region47: #{tpu_custom_call.1} parent=35 // pred_region
          %254 = dma.done %s246, 1024
        $region48: #{tpu_custom_call.1} parent=35 // pred_fallthru
          _
        %s255 = sand.u32 %s20, 1
        %s256 = scalar_lea.sflag [#allocation3], %s255
        %s257 = sand.u32 %s96, 1
        %s258 = smul.addr %s257, 64
        %s259 = scalar_lea.vmem [#allocation8], %s258
        // Predicated region
        $region49: #{tpu_custom_call.1} parent=35 // pred_check
          %p260 = pneg %p109
        $region50: #{tpu_custom_call.1} parent=35 // pred_check_branch
          %262 = sbr.rel (%p260) target = $region52
        $region51: #{tpu_custom_call.1} parent=35 // pred_region
          %264 = dma.done %s256, 1024
        $region52: #{tpu_custom_call.1} parent=35 // pred_fallthru
          _
        %p265 = pneg %p36
        %p266 = pneg %p33
        %p267 = pneg %p57
        %p268 = pneg %p54
        %s269 = sand.u32 %s20, 1
        %s270 = scalar_lea.sflag [#allocation3], %s269
        %s271 = sand.u32 %s70, 1
        %s272 = smul.addr %s271, 64
        %s273 = scalar_lea.vmem [#allocation7], %s272
        %p274 = pneg %p83
        %p275 = pneg %p80
        %s276 = sand.u32 %s20, 1
        %s277 = scalar_lea.sflag [#allocation3], %s276
        %s278 = sand.u32 %s96, 1
        %s279 = smul.addr %s278, 64
        %s280 = scalar_lea.vmem [#allocation8], %s279
        %p281 = pneg %p109
        %p282 = pneg %p106
        %p283 = pneg %p135
        %p284 = pneg %p132
        %s285 = sand.u32 %s122, 1
        %s286 = scalar_lea.sflag [#allocation4], %s285
        %s287 = sand.u32 %s122, 1
        %s288 = smul.addr %s287, 8
        %s289 = scalar_lea.vmem [#allocation9], %s288
        %s290 = smul.u32 4, %s20
        %s291 = smul.u32 4, %s20
        %v292 = vld [vmem:[%s249] sm:$0xff]
        %v293 = vld [vmem:[%s249 + $0x8] sm:$0xff]
        %v294 = vld [vmem:[%s249 + $0x10] sm:$0xff]
        %v295 = vld [vmem:[%s249 + $0x18] sm:$0xff]
        %v296 = vld [vmem:[%s249 + $0x20] sm:$0xff]
        %v297 = vld [vmem:[%s249 + $0x28] sm:$0xff]
        %v298 = vld [vmem:[%s249 + $0x30] sm:$0xff]
        %v299 = vld [vmem:[%s249 + $0x38] sm:$0xff]
        %v300 = vld [vmem:[%s259] sm:$0xff]
        %v301 = vld [vmem:[%s259 + $0x8] sm:$0xff]
        %v302 = vld [vmem:[%s259 + $0x10] sm:$0xff]
        %v303 = vld [vmem:[%s259 + $0x18] sm:$0xff]
        %v304 = vld [vmem:[%s259 + $0x20] sm:$0xff]
        %v305 = vld [vmem:[%s259 + $0x28] sm:$0xff]
        %v306 = vld [vmem:[%s259 + $0x30] sm:$0xff]
        %v307 = vld [vmem:[%s259 + $0x38] sm:$0xff]
        %v308 = vmul.f32 %v292, %v292
        %v309 = vmul.f32 %v293, %v293
        %v310 = vmul.f32 %v294, %v294
        %v311 = vmul.f32 %v295, %v295
        %v312 = vmul.f32 %v296, %v296
        %v313 = vmul.f32 %v297, %v297
        %v314 = vmul.f32 %v298, %v298
        %v315 = vmul.f32 %v299, %v299
        %v316 = vmul.f32 %v300, %v300
        %v317 = vmul.f32 %v301, %v301
        %v318 = vmul.f32 %v302, %v302
        %v319 = vmul.f32 %v303, %v303
        %v320 = vmul.f32 %v304, %v304
        %v321 = vmul.f32 %v305, %v305
        %v322 = vmul.f32 %v306, %v306
        %v323 = vmul.f32 %v307, %v307
        %v324 = vmul.f32 %v292, %v300
        %v325 = vmul.f32 %v293, %v301
        %v326 = vmul.f32 %v294, %v302
        %v327 = vmul.f32 %v295, %v303
        %v328 = vmul.f32 %v296, %v304
        %v329 = vmul.f32 %v297, %v305
        %v330 = vmul.f32 %v298, %v306
        %v331 = vmul.f32 %v299, %v307
        %v332 = vld [vmem:[#allocation2] sm:$0xff]
        %v333 = vld [vmem:[#allocation2 + $0x8] sm:$0xff]
        %vm334 = vcmask 130048
        %v336 = vsel %vm334, %v332, 0
        %v339 = vsel %vm334, %v333, 0
        %341 = vmatpush.msra.mxu0 0.0
        %342 = vmatpush.msra.mxu0 0.0
        %343 = vmatpush.msra.mxu0 0.0
        %344 = vmatpush.msra.mxu0 0.0
        %345 = vmatpush.msra.mxu0 0.0
        %346 = vmatpush.msra.mxu0 0.0
        %347 = vmatpush.msra.mxu0 0.0
        %348 = vmatpush.msra.mxu0 0.0
        %349 = vmatpush.msra.mxu0 0.0
        %350 = vmatpush.msra.mxu0 0.0
        %351 = vmatpush.msra.mxu0 0.0
        %352 = vmatpush.msra.mxu0 0.0
        %353 = vmatpush.msra.mxu0 0.0
        %354 = vmatpush.msra.mxu0 0.0
        %355 = vmatpush.msra.mxu0 %v293
        %356 = vmatpush.msra.mxu0 %v292
        %357 = vmatmul.f32.gmra.mxu0 %v336
        %v358 = vpop.f32.mrf.mxu0
        %v359 = vadd.f32 0.0, %v358
        %360 = vmatmul.f32.gmra.mxu0 %v339
        %v361 = vpop.f32.mrf.mxu0
        %v362 = vadd.f32 0.0, %v361
        %363 = vdwg.mxu0
        %364 = vmatpush.msra.mxu0 0.0
        %365 = vmatpush.msra.mxu0 0.0
        %366 = vmatpush.msra.mxu0 0.0
        %367 = vmatpush.msra.mxu0 0.0
        %368 = vmatpush.msra.mxu0 0.0
        %369 = vmatpush.msra.mxu0 0.0
        %370 = vmatpush.msra.mxu0 0.0
        %371 = vmatpush.msra.mxu0 0.0
        %372 = vmatpush.msra.mxu0 0.0
        %373 = vmatpush.msra.mxu0 0.0
        %374 = vmatpush.msra.mxu0 0.0
        %375 = vmatpush.msra.mxu0 0.0
        %376 = vmatpush.msra.mxu0 0.0
        %377 = vmatpush.msra.mxu0 0.0
        %378 = vmatpush.msra.mxu0 %v295
        %379 = vmatpush.msra.mxu0 %v294
        %380 = vmatmul.f32.gmra.mxu0 %v336
        %v381 = vpop.f32.mrf.mxu0
        %v382 = vadd.f32 0.0, %v381
        %383 = vmatmul.f32.gmra.mxu0 %v339
        %v384 = vpop.f32.mrf.mxu0
        %v385 = vadd.f32 0.0, %v384
        %386 = vdwg.mxu0
        %387 = vmatpush.msra.mxu0 0.0
        %388 = vmatpush.msra.mxu0 0.0
        %389 = vmatpush.msra.mxu0 0.0
        %390 = vmatpush.msra.mxu0 0.0
        %391 = vmatpush.msra.mxu0 0.0
        %392 = vmatpush.msra.mxu0 0.0
        %393 = vmatpush.msra.mxu0 0.0
        %394 = vmatpush.msra.mxu0 0.0
        %395 = vmatpush.msra.mxu0 0.0
        %396 = vmatpush.msra.mxu0 0.0
        %397 = vmatpush.msra.mxu0 0.0
        %398 = vmatpush.msra.mxu0 0.0
        %399 = vmatpush.msra.mxu0 0.0
        %400 = vmatpush.msra.mxu0 0.0
        %401 = vmatpush.msra.mxu0 %v297
        %402 = vmatpush.msra.mxu0 %v296
        %403 = vmatmul.f32.gmra.mxu0 %v336
        %v404 = vpop.f32.mrf.mxu0
        %v405 = vadd.f32 0.0, %v404
        %406 = vmatmul.f32.gmra.mxu0 %v339
        %v407 = vpop.f32.mrf.mxu0
        %v408 = vadd.f32 0.0, %v407
        %409 = vdwg.mxu0
        %410 = vmatpush.msra.mxu0 0.0
        %411 = vmatpush.msra.mxu0 0.0
        %412 = vmatpush.msra.mxu0 0.0
        %413 = vmatpush.msra.mxu0 0.0
        %414 = vmatpush.msra.mxu0 0.0
        %415 = vmatpush.msra.mxu0 0.0
        %416 = vmatpush.msra.mxu0 0.0
        %417 = vmatpush.msra.mxu0 0.0
        %418 = vmatpush.msra.mxu0 0.0
        %419 = vmatpush.msra.mxu0 0.0
        %420 = vmatpush.msra.mxu0 0.0
        %421 = vmatpush.msra.mxu0 0.0
        %422 = vmatpush.msra.mxu0 0.0
        %423 = vmatpush.msra.mxu0 0.0
        %424 = vmatpush.msra.mxu0 %v299
        %425 = vmatpush.msra.mxu0 %v298
        %426 = vmatmul.f32.gmra.mxu0 %v336
        %v427 = vpop.f32.mrf.mxu0
        %v428 = vadd.f32 0.0, %v427
        %429 = vmatmul.f32.gmra.mxu0 %v339
        %v430 = vpop.f32.mrf.mxu0
        %v431 = vadd.f32 0.0, %v430
        %432 = vdwg.mxu0
        %433 = vmatpush.msra.mxu0 0.0
        %434 = vmatpush.msra.mxu0 0.0
        %435 = vmatpush.msra.mxu0 0.0
        %436 = vmatpush.msra.mxu0 0.0
        %437 = vmatpush.msra.mxu0 0.0
        %438 = vmatpush.msra.mxu0 0.0
        %439 = vmatpush.msra.mxu0 0.0
        %440 = vmatpush.msra.mxu0 0.0
        %441 = vmatpush.msra.mxu0 0.0
        %442 = vmatpush.msra.mxu0 0.0
        %443 = vmatpush.msra.mxu0 0.0
        %444 = vmatpush.msra.mxu0 0.0
        %445 = vmatpush.msra.mxu0 0.0
        %446 = vmatpush.msra.mxu0 0.0
        %447 = vmatpush.msra.mxu0 %v301
        %448 = vmatpush.msra.mxu0 %v300
        %449 = vmatmul.f32.gmra.mxu0 %v336
        %v450 = vpop.f32.mrf.mxu0
        %v451 = vadd.f32 0.0, %v450
        %452 = vmatmul.f32.gmra.mxu0 %v339
        %v453 = vpop.f32.mrf.mxu0
        %v454 = vadd.f32 0.0, %v453
        %455 = vdwg.mxu0
        %456 = vmatpush.msra.mxu0 0.0
        %457 = vmatpush.msra.mxu0 0.0
        %458 = vmatpush.msra.mxu0 0.0
        %459 = vmatpush.msra.mxu0 0.0
        %460 = vmatpush.msra.mxu0 0.0
        %461 = vmatpush.msra.mxu0 0.0
        %462 = vmatpush.msra.mxu0 0.0
        %463 = vmatpush.msra.mxu0 0.0
        %464 = vmatpush.msra.mxu0 0.0
        %465 = vmatpush.msra.mxu0 0.0
        %466 = vmatpush.msra.mxu0 0.0
        %467 = vmatpush.msra.mxu0 0.0
        %468 = vmatpush.msra.mxu0 0.0
        %469 = vmatpush.msra.mxu0 0.0
        %470 = vmatpush.msra.mxu0 %v303
        %471 = vmatpush.msra.mxu0 %v302
        %472 = vmatmul.f32.gmra.mxu0 %v336
        %v473 = vpop.f32.mrf.mxu0
        %v474 = vadd.f32 0.0, %v473
        %475 = vmatmul.f32.gmra.mxu0 %v339
        %v476 = vpop.f32.mrf.mxu0
        %v477 = vadd.f32 0.0, %v476
        %478 = vdwg.mxu0
        %479 = vmatpush.msra.mxu0 0.0
        %480 = vmatpush.msra.mxu0 0.0
        %481 = vmatpush.msra.mxu0 0.0
        %482 = vmatpush.msra.mxu0 0.0
        %483 = vmatpush.msra.mxu0 0.0
        %484 = vmatpush.msra.mxu0 0.0
        %485 = vmatpush.msra.mxu0 0.0
        %486 = vmatpush.msra.mxu0 0.0
        %487 = vmatpush.msra.mxu0 0.0
        %488 = vmatpush.msra.mxu0 0.0
        %489 = vmatpush.msra.mxu0 0.0
        %490 = vmatpush.msra.mxu0 0.0
        %491 = vmatpush.msra.mxu0 0.0
        %492 = vmatpush.msra.mxu0 0.0
        %493 = vmatpush.msra.mxu0 %v305
        %494 = vmatpush.msra.mxu0 %v304
        %495 = vmatmul.f32.gmra.mxu0 %v336
        %v496 = vpop.f32.mrf.mxu0
        %v497 = vadd.f32 0.0, %v496
        %498 = vmatmul.f32.gmra.mxu0 %v339
        %v499 = vpop.f32.mrf.mxu0
        %v500 = vadd.f32 0.0, %v499
        %501 = vdwg.mxu0
        %502 = vmatpush.msra.mxu0 0.0
        %503 = vmatpush.msra.mxu0 0.0
        %504 = vmatpush.msra.mxu0 0.0
        %505 = vmatpush.msra.mxu0 0.0
        %506 = vmatpush.msra.mxu0 0.0
        %507 = vmatpush.msra.mxu0 0.0
        %508 = vmatpush.msra.mxu0 0.0
        %509 = vmatpush.msra.mxu0 0.0
        %510 = vmatpush.msra.mxu0 0.0
        %511 = vmatpush.msra.mxu0 0.0
        %512 = vmatpush.msra.mxu0 0.0
        %513 = vmatpush.msra.mxu0 0.0
        %514 = vmatpush.msra.mxu0 0.0
        %515 = vmatpush.msra.mxu0 0.0
        %516 = vmatpush.msra.mxu0 %v307
        %517 = vmatpush.msra.mxu0 %v306
        %518 = vmatmul.f32.gmra.mxu0 %v336
        %v519 = vpop.f32.mrf.mxu0
        %v520 = vadd.f32 0.0, %v519
        %521 = vmatmul.f32.gmra.mxu0 %v339
        %v522 = vpop.f32.mrf.mxu0
        %v523 = vadd.f32 0.0, %v522
        %524 = vdwg.mxu0
        %525 = vmatpush.msra.mxu0 0.0
        %526 = vmatpush.msra.mxu0 0.0
        %527 = vmatpush.msra.mxu0 0.0
        %528 = vmatpush.msra.mxu0 0.0
        %529 = vmatpush.msra.mxu0 0.0
        %530 = vmatpush.msra.mxu0 0.0
        %531 = vmatpush.msra.mxu0 0.0
        %532 = vmatpush.msra.mxu0 0.0
        %533 = vmatpush.msra.mxu0 0.0
        %534 = vmatpush.msra.mxu0 0.0
        %535 = vmatpush.msra.mxu0 0.0
        %536 = vmatpush.msra.mxu0 0.0
        %537 = vmatpush.msra.mxu0 0.0
        %538 = vmatpush.msra.mxu0 0.0
        %539 = vmatpush.msra.mxu0 %v309
        %540 = vmatpush.msra.mxu0 %v308
        %541 = vmatmul.f32.gmra.mxu0 %v336
        %v542 = vpop.f32.mrf.mxu0
        %v543 = vadd.f32 0.0, %v542
        %544 = vmatmul.f32.gmra.mxu0 %v339
        %v545 = vpop.f32.mrf.mxu0
        %v546 = vadd.f32 0.0, %v545
        %547 = vdwg.mxu0
        %548 = vmatpush.msra.mxu0 0.0
        %549 = vmatpush.msra.mxu0 0.0
        %550 = vmatpush.msra.mxu0 0.0
        %551 = vmatpush.msra.mxu0 0.0
        %552 = vmatpush.msra.mxu0 0.0
        %553 = vmatpush.msra.mxu0 0.0
        %554 = vmatpush.msra.mxu0 0.0
        %555 = vmatpush.msra.mxu0 0.0
        %556 = vmatpush.msra.mxu0 0.0
        %557 = vmatpush.msra.mxu0 0.0
        %558 = vmatpush.msra.mxu0 0.0
        %559 = vmatpush.msra.mxu0 0.0
        %560 = vmatpush.msra.mxu0 0.0
        %561 = vmatpush.msra.mxu0 0.0
        %562 = vmatpush.msra.mxu0 %v311
        %563 = vmatpush.msra.mxu0 %v310
        %564 = vmatmul.f32.gmra.mxu0 %v336
        %v565 = vpop.f32.mrf.mxu0
        %v566 = vadd.f32 0.0, %v565
        %567 = vmatmul.f32.gmra.mxu0 %v339
        %v568 = vpop.f32.mrf.mxu0
        %v569 = vadd.f32 0.0, %v568
        %570 = vdwg.mxu0
        %571 = vmatpush.msra.mxu0 0.0
        %572 = vmatpush.msra.mxu0 0.0
        %573 = vmatpush.msra.mxu0 0.0
        %574 = vmatpush.msra.mxu0 0.0
        %575 = vmatpush.msra.mxu0 0.0
        %576 = vmatpush.msra.mxu0 0.0
        %577 = vmatpush.msra.mxu0 0.0
        %578 = vmatpush.msra.mxu0 0.0
        %579 = vmatpush.msra.mxu0 0.0
        %580 = vmatpush.msra.mxu0 0.0
        %581 = vmatpush.msra.mxu0 0.0
        %582 = vmatpush.msra.mxu0 0.0
        %583 = vmatpush.msra.mxu0 0.0
        %584 = vmatpush.msra.mxu0 0.0
        %585 = vmatpush.msra.mxu0 %v313
        %586 = vmatpush.msra.mxu0 %v312
        %587 = vmatmul.f32.gmra.mxu0 %v336
        %v588 = vpop.f32.mrf.mxu0
        %v589 = vadd.f32 0.0, %v588
        %590 = vmatmul.f32.gmra.mxu0 %v339
        %v591 = vpop.f32.mrf.mxu0
        %v592 = vadd.f32 0.0, %v591
        %593 = vdwg.mxu0
        %594 = vmatpush.msra.mxu0 0.0
        %595 = vmatpush.msra.mxu0 0.0
        %596 = vmatpush.msra.mxu0 0.0
        %597 = vmatpush.msra.mxu0 0.0
        %598 = vmatpush.msra.mxu0 0.0
        %599 = vmatpush.msra.mxu0 0.0
        %600 = vmatpush.msra.mxu0 0.0
        %601 = vmatpush.msra.mxu0 0.0
        %602 = vmatpush.msra.mxu0 0.0
        %603 = vmatpush.msra.mxu0 0.0
        %604 = vmatpush.msra.mxu0 0.0
        %605 = vmatpush.msra.mxu0 0.0
        %606 = vmatpush.msra.mxu0 0.0
        %607 = vmatpush.msra.mxu0 0.0
        %608 = vmatpush.msra.mxu0 %v315
        %609 = vmatpush.msra.mxu0 %v314
        %610 = vmatmul.f32.gmra.mxu0 %v336
        %v611 = vpop.f32.mrf.mxu0
        %v612 = vadd.f32 0.0, %v611
        %613 = vmatmul.f32.gmra.mxu0 %v339
        %v614 = vpop.f32.mrf.mxu0
        %v615 = vadd.f32 0.0, %v614
        %616 = vdwg.mxu0
        %617 = vmatpush.msra.mxu0 0.0
        %618 = vmatpush.msra.mxu0 0.0
        %619 = vmatpush.msra.mxu0 0.0
        %620 = vmatpush.msra.mxu0 0.0
        %621 = vmatpush.msra.mxu0 0.0
        %622 = vmatpush.msra.mxu0 0.0
        %623 = vmatpush.msra.mxu0 0.0
        %624 = vmatpush.msra.mxu0 0.0
        %625 = vmatpush.msra.mxu0 0.0
        %626 = vmatpush.msra.mxu0 0.0
        %627 = vmatpush.msra.mxu0 0.0
        %628 = vmatpush.msra.mxu0 0.0
        %629 = vmatpush.msra.mxu0 0.0
        %630 = vmatpush.msra.mxu0 0.0
        %631 = vmatpush.msra.mxu0 %v317
        %632 = vmatpush.msra.mxu0 %v316
        %633 = vmatmul.f32.gmra.mxu0 %v336
        %v634 = vpop.f32.mrf.mxu0
        %v635 = vadd.f32 0.0, %v634
        %636 = vmatmul.f32.gmra.mxu0 %v339
        %v637 = vpop.f32.mrf.mxu0
        %v638 = vadd.f32 0.0, %v637
        %639 = vdwg.mxu0
        %640 = vmatpush.msra.mxu0 0.0
        %641 = vmatpush.msra.mxu0 0.0
        %642 = vmatpush.msra.mxu0 0.0
        %643 = vmatpush.msra.mxu0 0.0
        %644 = vmatpush.msra.mxu0 0.0
        %645 = vmatpush.msra.mxu0 0.0
        %646 = vmatpush.msra.mxu0 0.0
        %647 = vmatpush.msra.mxu0 0.0
        %648 = vmatpush.msra.mxu0 0.0
        %649 = vmatpush.msra.mxu0 0.0
        %650 = vmatpush.msra.mxu0 0.0
        %651 = vmatpush.msra.mxu0 0.0
        %652 = vmatpush.msra.mxu0 0.0
        %653 = vmatpush.msra.mxu0 0.0
        %654 = vmatpush.msra.mxu0 %v319
        %655 = vmatpush.msra.mxu0 %v318
        %656 = vmatmul.f32.gmra.mxu0 %v336
        %v657 = vpop.f32.mrf.mxu0
        %v658 = vadd.f32 0.0, %v657
        %659 = vmatmul.f32.gmra.mxu0 %v339
        %v660 = vpop.f32.mrf.mxu0
        %v661 = vadd.f32 0.0, %v660
        %662 = vdwg.mxu0
        %663 = vmatpush.msra.mxu0 0.0
        %664 = vmatpush.msra.mxu0 0.0
        %665 = vmatpush.msra.mxu0 0.0
        %666 = vmatpush.msra.mxu0 0.0
        %667 = vmatpush.msra.mxu0 0.0
        %668 = vmatpush.msra.mxu0 0.0
        %669 = vmatpush.msra.mxu0 0.0
        %670 = vmatpush.msra.mxu0 0.0
        %671 = vmatpush.msra.mxu0 0.0
        %672 = vmatpush.msra.mxu0 0.0
        %673 = vmatpush.msra.mxu0 0.0
        %674 = vmatpush.msra.mxu0 0.0
        %675 = vmatpush.msra.mxu0 0.0
        %676 = vmatpush.msra.mxu0 0.0
        %677 = vmatpush.msra.mxu0 %v321
        %678 = vmatpush.msra.mxu0 %v320
        %679 = vmatmul.f32.gmra.mxu0 %v336
        %v680 = vpop.f32.mrf.mxu0
        %v681 = vadd.f32 0.0, %v680
        %682 = vmatmul.f32.gmra.mxu0 %v339
        %v683 = vpop.f32.mrf.mxu0
        %v684 = vadd.f32 0.0, %v683
        %685 = vdwg.mxu0
        %686 = vmatpush.msra.mxu0 0.0
        %687 = vmatpush.msra.mxu0 0.0
        %688 = vmatpush.msra.mxu0 0.0
        %689 = vmatpush.msra.mxu0 0.0
        %690 = vmatpush.msra.mxu0 0.0
        %691 = vmatpush.msra.mxu0 0.0
        %692 = vmatpush.msra.mxu0 0.0
        %693 = vmatpush.msra.mxu0 0.0
        %694 = vmatpush.msra.mxu0 0.0
        %695 = vmatpush.msra.mxu0 0.0
        %696 = vmatpush.msra.mxu0 0.0
        %697 = vmatpush.msra.mxu0 0.0
        %698 = vmatpush.msra.mxu0 0.0
        %699 = vmatpush.msra.mxu0 0.0
        %700 = vmatpush.msra.mxu0 %v323
        %701 = vmatpush.msra.mxu0 %v322
        %702 = vmatmul.f32.gmra.mxu0 %v336
        %v703 = vpop.f32.mrf.mxu0
        %v704 = vadd.f32 0.0, %v703
        %705 = vmatmul.f32.gmra.mxu0 %v339
        %v706 = vpop.f32.mrf.mxu0
        %v707 = vadd.f32 0.0, %v706
        %708 = vdwg.mxu0
        %709 = vmatpush.msra.mxu0 0.0
        %710 = vmatpush.msra.mxu0 0.0
        %711 = vmatpush.msra.mxu0 0.0
        %712 = vmatpush.msra.mxu0 0.0
        %713 = vmatpush.msra.mxu0 0.0
        %714 = vmatpush.msra.mxu0 0.0
        %715 = vmatpush.msra.mxu0 0.0
        %716 = vmatpush.msra.mxu0 0.0
        %717 = vmatpush.msra.mxu0 0.0
        %718 = vmatpush.msra.mxu0 0.0
        %719 = vmatpush.msra.mxu0 0.0
        %720 = vmatpush.msra.mxu0 0.0
        %721 = vmatpush.msra.mxu0 0.0
        %722 = vmatpush.msra.mxu0 0.0
        %723 = vmatpush.msra.mxu0 %v325
        %724 = vmatpush.msra.mxu0 %v324
        %725 = vmatmul.f32.gmra.mxu0 %v336
        %v726 = vpop.f32.mrf.mxu0
        %v727 = vadd.f32 0.0, %v726
        %728 = vmatmul.f32.gmra.mxu0 %v339
        %v729 = vpop.f32.mrf.mxu0
        %v730 = vadd.f32 0.0, %v729
        %731 = vdwg.mxu0
        %732 = vmatpush.msra.mxu0 0.0
        %733 = vmatpush.msra.mxu0 0.0
        %734 = vmatpush.msra.mxu0 0.0
        %735 = vmatpush.msra.mxu0 0.0
        %736 = vmatpush.msra.mxu0 0.0
        %737 = vmatpush.msra.mxu0 0.0
        %738 = vmatpush.msra.mxu0 0.0
        %739 = vmatpush.msra.mxu0 0.0
        %740 = vmatpush.msra.mxu0 0.0
        %741 = vmatpush.msra.mxu0 0.0
        %742 = vmatpush.msra.mxu0 0.0
        %743 = vmatpush.msra.mxu0 0.0
        %744 = vmatpush.msra.mxu0 0.0
        %745 = vmatpush.msra.mxu0 0.0
        %746 = vmatpush.msra.mxu0 %v327
        %747 = vmatpush.msra.mxu0 %v326
        %748 = vmatmul.f32.gmra.mxu0 %v336
        %v749 = vpop.f32.mrf.mxu0
        %v750 = vadd.f32 0.0, %v749
        %751 = vmatmul.f32.gmra.mxu0 %v339
        %v752 = vpop.f32.mrf.mxu0
        %v753 = vadd.f32 0.0, %v752
        %754 = vdwg.mxu0
        %755 = vmatpush.msra.mxu0 0.0
        %756 = vmatpush.msra.mxu0 0.0
        %757 = vmatpush.msra.mxu0 0.0
        %758 = vmatpush.msra.mxu0 0.0
        %759 = vmatpush.msra.mxu0 0.0
        %760 = vmatpush.msra.mxu0 0.0
        %761 = vmatpush.msra.mxu0 0.0
        %762 = vmatpush.msra.mxu0 0.0
        %763 = vmatpush.msra.mxu0 0.0
        %764 = vmatpush.msra.mxu0 0.0
        %765 = vmatpush.msra.mxu0 0.0
        %766 = vmatpush.msra.mxu0 0.0
        %767 = vmatpush.msra.mxu0 0.0
        %768 = vmatpush.msra.mxu0 0.0
        %769 = vmatpush.msra.mxu0 %v329
        %770 = vmatpush.msra.mxu0 %v328
        %771 = vmatmul.f32.gmra.mxu0 %v336
        %v772 = vpop.f32.mrf.mxu0
        %v773 = vadd.f32 0.0, %v772
        %774 = vmatmul.f32.gmra.mxu0 %v339
        %v775 = vpop.f32.mrf.mxu0
        %v776 = vadd.f32 0.0, %v775
        %777 = vdwg.mxu0
        %778 = vmatpush.msra.mxu0 0.0
        %779 = vmatpush.msra.mxu0 0.0
        %780 = vmatpush.msra.mxu0 0.0
        %781 = vmatpush.msra.mxu0 0.0
        %782 = vmatpush.msra.mxu0 0.0
        %783 = vmatpush.msra.mxu0 0.0
        %784 = vmatpush.msra.mxu0 0.0
        %785 = vmatpush.msra.mxu0 0.0
        %786 = vmatpush.msra.mxu0 0.0
        %787 = vmatpush.msra.mxu0 0.0
        %788 = vmatpush.msra.mxu0 0.0
        %789 = vmatpush.msra.mxu0 0.0
        %790 = vmatpush.msra.mxu0 0.0
        %791 = vmatpush.msra.mxu0 0.0
        %792 = vmatpush.msra.mxu0 %v331
        %793 = vmatpush.msra.mxu0 %v330
        %794 = vmatmul.f32.gmra.mxu0 %v336
        %v795 = vpop.f32.mrf.mxu0
        %v796 = vadd.f32 0.0, %v795
        %797 = vmatmul.f32.gmra.mxu0 %v339
        %v798 = vpop.f32.mrf.mxu0
        %v799 = vadd.f32 0.0, %v798
        %800 = vdwg.mxu0
        %v801 = vld [vmem:[#allocation5] sm:$0xff]
        %v802 = vld [vmem:[#allocation5 + $0x8] sm:$0xff]
        %v804 = vsel %vm334, %v359, 0
        %v807 = vsel %vm334, %v362, 0
        %v810 = vsel %vm334, %v382, 0
        %v813 = vsel %vm334, %v385, 0
        %v816 = vsel %vm334, %v405, 0
        %v819 = vsel %vm334, %v408, 0
        %v822 = vsel %vm334, %v428, 0
        %v825 = vsel %vm334, %v431, 0
        %v828 = vsel %vm334, %v451, 0
        %v831 = vsel %vm334, %v454, 0
        %v834 = vsel %vm334, %v474, 0
        %v837 = vsel %vm334, %v477, 0
        %v840 = vsel %vm334, %v497, 0
        %v843 = vsel %vm334, %v500, 0
        %v846 = vsel %vm334, %v520, 0
        %v849 = vsel %vm334, %v523, 0
        %v852 = vsel %vm334, %v543, 0
        %v855 = vsel %vm334, %v546, 0
        %v858 = vsel %vm334, %v566, 0
        %v861 = vsel %vm334, %v569, 0
        %v864 = vsel %vm334, %v589, 0
        %v867 = vsel %vm334, %v592, 0
        %v870 = vsel %vm334, %v612, 0
        %v873 = vsel %vm334, %v615, 0
        %v876 = vsel %vm334, %v635, 0
        %v879 = vsel %vm334, %v638, 0
        %v882 = vsel %vm334, %v658, 0
        %v885 = vsel %vm334, %v661, 0
        %v888 = vsel %vm334, %v681, 0
        %v891 = vsel %vm334, %v684, 0
        %v894 = vsel %vm334, %v704, 0
        %v897 = vsel %vm334, %v707, 0
        %v900 = vsel %vm334, %v727, 0
        %v903 = vsel %vm334, %v730, 0
        %v906 = vsel %vm334, %v750, 0
        %v909 = vsel %vm334, %v753, 0
        %v912 = vsel %vm334, %v773, 0
        %v915 = vsel %vm334, %v776, 0
        %v918 = vsel %vm334, %v796, 0
        %v921 = vsel %vm334, %v799, 0
        %923 = vmatpush.msra.mxu0 0.0
        %924 = vmatpush.msra.mxu0 0.0
        %925 = vmatpush.msra.mxu0 0.0
        %926 = vmatpush.msra.mxu0 0.0
        %927 = vmatpush.msra.mxu0 0.0
        %928 = vmatpush.msra.mxu0 0.0
        %929 = vmatpush.msra.mxu0 0.0
        %930 = vmatpush.msra.mxu0 0.0
        %931 = vmatpush.msra.mxu0 0.0
        %932 = vmatpush.msra.mxu0 0.0
        %933 = vmatpush.msra.mxu0 0.0
        %934 = vmatpush.msra.mxu0 0.0
        %935 = vmatpush.msra.mxu0 0.0
        %936 = vmatpush.msra.mxu0 0.0
        %937 = vmatpush.msra.mxu0 %v802
        %938 = vmatpush.msra.mxu0 %v801
        %939 = vmatmul.f32.gmra.mxu0 %v804
        %v940 = vpop.f32.mrf.mxu0
        %v941 = vadd.f32 0.0, %v940
        %942 = vmatmul.f32.gmra.mxu0 %v807
        %v943 = vpop.f32.mrf.mxu0
        %v944 = vadd.f32 0.0, %v943
        %945 = vmatmul.f32.gmra.mxu0 %v810
        %v946 = vpop.f32.mrf.mxu0
        %v947 = vadd.f32 0.0, %v946
        %948 = vmatmul.f32.gmra.mxu0 %v813
        %v949 = vpop.f32.mrf.mxu0
        %v950 = vadd.f32 0.0, %v949
        %951 = vmatmul.f32.gmra.mxu0 %v816
        %v952 = vpop.f32.mrf.mxu0
        %v953 = vadd.f32 0.0, %v952
        %954 = vmatmul.f32.gmra.mxu0 %v819
        %v955 = vpop.f32.mrf.mxu0
        %v956 = vadd.f32 0.0, %v955
        %957 = vmatmul.f32.gmra.mxu0 %v822
        %v958 = vpop.f32.mrf.mxu0
        %v959 = vadd.f32 0.0, %v958
        %960 = vmatmul.f32.gmra.mxu0 %v825
        %v961 = vpop.f32.mrf.mxu0
        %v962 = vadd.f32 0.0, %v961
        %963 = vmatmul.f32.gmra.mxu0 %v828
        %v964 = vpop.f32.mrf.mxu0
        %v965 = vadd.f32 0.0, %v964
        %966 = vmatmul.f32.gmra.mxu0 %v831
        %v967 = vpop.f32.mrf.mxu0
        %v968 = vadd.f32 0.0, %v967
        %969 = vmatmul.f32.gmra.mxu0 %v834
        %v970 = vpop.f32.mrf.mxu0
        %v971 = vadd.f32 0.0, %v970
        %972 = vmatmul.f32.gmra.mxu0 %v837
        %v973 = vpop.f32.mrf.mxu0
        %v974 = vadd.f32 0.0, %v973
        %975 = vmatmul.f32.gmra.mxu0 %v840
        %v976 = vpop.f32.mrf.mxu0
        %v977 = vadd.f32 0.0, %v976
        %978 = vmatmul.f32.gmra.mxu0 %v843
        %v979 = vpop.f32.mrf.mxu0
        %v980 = vadd.f32 0.0, %v979
        %981 = vmatmul.f32.gmra.mxu0 %v846
        %v982 = vpop.f32.mrf.mxu0
        %v983 = vadd.f32 0.0, %v982
        %984 = vmatmul.f32.gmra.mxu0 %v849
        %v985 = vpop.f32.mrf.mxu0
        %v986 = vadd.f32 0.0, %v985
        %987 = vmatmul.f32.gmra.mxu0 %v852
        %v988 = vpop.f32.mrf.mxu0
        %v989 = vadd.f32 0.0, %v988
        %990 = vmatmul.f32.gmra.mxu0 %v855
        %v991 = vpop.f32.mrf.mxu0
        %v992 = vadd.f32 0.0, %v991
        %993 = vmatmul.f32.gmra.mxu0 %v858
        %v994 = vpop.f32.mrf.mxu0
        %v995 = vadd.f32 0.0, %v994
        %996 = vmatmul.f32.gmra.mxu0 %v861
        %v997 = vpop.f32.mrf.mxu0
        %v998 = vadd.f32 0.0, %v997
        %999 = vmatmul.f32.gmra.mxu0 %v864
        %v1000 = vpop.f32.mrf.mxu0
        %v1001 = vadd.f32 0.0, %v1000
        %1002 = vmatmul.f32.gmra.mxu0 %v867
        %v1003 = vpop.f32.mrf.mxu0
        %v1004 = vadd.f32 0.0, %v1003
        %1005 = vmatmul.f32.gmra.mxu0 %v870
        %v1006 = vpop.f32.mrf.mxu0
        %v1007 = vadd.f32 0.0, %v1006
        %1008 = vmatmul.f32.gmra.mxu0 %v873
        %v1009 = vpop.f32.mrf.mxu0
        %v1010 = vadd.f32 0.0, %v1009
        %1011 = vmatmul.f32.gmra.mxu0 %v876
        %v1012 = vpop.f32.mrf.mxu0
        %v1013 = vadd.f32 0.0, %v1012
        %1014 = vmatmul.f32.gmra.mxu0 %v879
        %v1015 = vpop.f32.mrf.mxu0
        %v1016 = vadd.f32 0.0, %v1015
        %1017 = vmatmul.f32.gmra.mxu0 %v882
        %v1018 = vpop.f32.mrf.mxu0
        %v1019 = vadd.f32 0.0, %v1018
        %1020 = vmatmul.f32.gmra.mxu0 %v885
        %v1021 = vpop.f32.mrf.mxu0
        %v1022 = vadd.f32 0.0, %v1021
        %1023 = vmatmul.f32.gmra.mxu0 %v888
        %v1024 = vpop.f32.mrf.mxu0
        %v1025 = vadd.f32 0.0, %v1024
        %1026 = vmatmul.f32.gmra.mxu0 %v891
        %v1027 = vpop.f32.mrf.mxu0
        %v1028 = vadd.f32 0.0, %v1027
        %1029 = vmatmul.f32.gmra.mxu0 %v894
        %v1030 = vpop.f32.mrf.mxu0
        %v1031 = vadd.f32 0.0, %v1030
        %1032 = vmatmul.f32.gmra.mxu0 %v897
        %v1033 = vpop.f32.mrf.mxu0
        %v1034 = vadd.f32 0.0, %v1033
        %1035 = vmatmul.f32.gmra.mxu0 %v900
        %v1036 = vpop.f32.mrf.mxu0
        %v1037 = vadd.f32 0.0, %v1036
        %1038 = vmatmul.f32.gmra.mxu0 %v903
        %v1039 = vpop.f32.mrf.mxu0
        %v1040 = vadd.f32 0.0, %v1039
        %1041 = vmatmul.f32.gmra.mxu0 %v906
        %v1042 = vpop.f32.mrf.mxu0
        %v1043 = vadd.f32 0.0, %v1042
        %1044 = vmatmul.f32.gmra.mxu0 %v909
        %v1045 = vpop.f32.mrf.mxu0
        %v1046 = vadd.f32 0.0, %v1045
        %1047 = vmatmul.f32.gmra.mxu0 %v912
        %v1048 = vpop.f32.mrf.mxu0
        %v1049 = vadd.f32 0.0, %v1048
        %1050 = vmatmul.f32.gmra.mxu0 %v915
        %v1051 = vpop.f32.mrf.mxu0
        %v1052 = vadd.f32 0.0, %v1051
        %1053 = vmatmul.f32.gmra.mxu0 %v918
        %v1054 = vpop.f32.mrf.mxu0
        %v1055 = vadd.f32 0.0, %v1054
        %1056 = vmatmul.f32.gmra.mxu0 %v921
        %v1057 = vpop.f32.mrf.mxu0
        %v1058 = vadd.f32 0.0, %v1057
        %1059 = vdwg.mxu0
        %v1060 = vmul.f32 %v941, %v941
        %v1061 = vmul.f32 %v944, %v944
        %v1062 = vmul.f32 %v947, %v947
        %v1063 = vmul.f32 %v950, %v950
        %v1064 = vmul.f32 %v953, %v953
        %v1065 = vmul.f32 %v956, %v956
        %v1066 = vmul.f32 %v959, %v959
        %v1067 = vmul.f32 %v962, %v962
        %v1068 = vmul.f32 %v965, %v965
        %v1069 = vmul.f32 %v968, %v968
        %v1070 = vmul.f32 %v971, %v971
        %v1071 = vmul.f32 %v974, %v974
        %v1072 = vmul.f32 %v977, %v977
        %v1073 = vmul.f32 %v980, %v980
        %v1074 = vmul.f32 %v983, %v983
        %v1075 = vmul.f32 %v986, %v986
        %v1076 = vmul.f32 %v941, %v965
        %v1077 = vmul.f32 %v944, %v968
        %v1078 = vmul.f32 %v947, %v971
        %v1079 = vmul.f32 %v950, %v974
        %v1080 = vmul.f32 %v953, %v977
        %v1081 = vmul.f32 %v956, %v980
        %v1082 = vmul.f32 %v959, %v983
        %v1083 = vmul.f32 %v962, %v986
        %v1084 = vsub.f32 %v989, %v1060
        %v1085 = vsub.f32 %v992, %v1061
        %v1086 = vsub.f32 %v995, %v1062
        %v1087 = vsub.f32 %v998, %v1063
        %v1088 = vsub.f32 %v1001, %v1064
        %v1089 = vsub.f32 %v1004, %v1065
        %v1090 = vsub.f32 %v1007, %v1066
        %v1091 = vsub.f32 %v1010, %v1067
        %v1092 = vsub.f32 %v1013, %v1068
        %v1093 = vsub.f32 %v1016, %v1069
        %v1094 = vsub.f32 %v1019, %v1070
        %v1095 = vsub.f32 %v1022, %v1071
        %v1096 = vsub.f32 %v1025, %v1072
        %v1097 = vsub.f32 %v1028, %v1073
        %v1098 = vsub.f32 %v1031, %v1074
        %v1099 = vsub.f32 %v1034, %v1075
        %v1100 = vsub.f32 %v1037, %v1076
        %v1101 = vsub.f32 %v1040, %v1077
        %v1102 = vsub.f32 %v1043, %v1078
        %v1103 = vsub.f32 %v1046, %v1079
        %v1104 = vsub.f32 %v1049, %v1080
        %v1105 = vsub.f32 %v1052, %v1081
        %v1106 = vsub.f32 %v1055, %v1082
        %v1107 = vsub.f32 %v1058, %v1083
        %v1108 = vmul.f32 %v1076, 2.0
        %v1109 = vmul.f32 %v1077, 2.0
        %v1110 = vmul.f32 %v1078, 2.0
        %v1111 = vmul.f32 %v1079, 2.0
        %v1112 = vmul.f32 %v1080, 2.0
        %v1113 = vmul.f32 %v1081, 2.0
        %v1114 = vmul.f32 %v1082, 2.0
        %v1115 = vmul.f32 %v1083, 2.0
        %v1116 = vadd.f32 %v1108, 0.0001
        %v1117 = vadd.f32 %v1109, 0.0001
        %v1118 = vadd.f32 %v1110, 0.0001
        %v1119 = vadd.f32 %v1111, 0.0001
        %v1120 = vadd.f32 %v1112, 0.0001
        %v1121 = vadd.f32 %v1113, 0.0001
        %v1122 = vadd.f32 %v1114, 0.0001
        %v1123 = vadd.f32 %v1115, 0.0001
        %v1124 = vmul.f32 %v1100, 2.0
        %v1125 = vmul.f32 %v1101, 2.0
        %v1126 = vmul.f32 %v1102, 2.0
        %v1127 = vmul.f32 %v1103, 2.0
        %v1128 = vmul.f32 %v1104, 2.0
        %v1129 = vmul.f32 %v1105, 2.0
        %v1130 = vmul.f32 %v1106, 2.0
        %v1131 = vmul.f32 %v1107, 2.0
        %v1132 = vadd.f32 %v1124, 0.0009
        %v1133 = vadd.f32 %v1125, 0.0009
        %v1134 = vadd.f32 %v1126, 0.0009
        %v1135 = vadd.f32 %v1127, 0.0009
        %v1136 = vadd.f32 %v1128, 0.0009
        %v1137 = vadd.f32 %v1129, 0.0009
        %v1138 = vadd.f32 %v1130, 0.0009
        %v1139 = vadd.f32 %v1131, 0.0009
        %v1140 = vmul.f32 %v1116, %v1132
        %v1141 = vmul.f32 %v1117, %v1133
        %v1142 = vmul.f32 %v1118, %v1134
        %v1143 = vmul.f32 %v1119, %v1135
        %v1144 = vmul.f32 %v1120, %v1136
        %v1145 = vmul.f32 %v1121, %v1137
        %v1146 = vmul.f32 %v1122, %v1138
        %v1147 = vmul.f32 %v1123, %v1139
        %v1148 = vadd.f32 %v1060, %v1068
        %v1149 = vadd.f32 %v1061, %v1069
        %v1150 = vadd.f32 %v1062, %v1070
        %v1151 = vadd.f32 %v1063, %v1071
        %v1152 = vadd.f32 %v1064, %v1072
        %v1153 = vadd.f32 %v1065, %v1073
        %v1154 = vadd.f32 %v1066, %v1074
        %v1155 = vadd.f32 %v1067, %v1075
        %v1156 = vadd.f32 %v1148, 0.0001
        %v1157 = vadd.f32 %v1149, 0.0001
        %v1158 = vadd.f32 %v1150, 0.0001
        %v1159 = vadd.f32 %v1151, 0.0001
        %v1160 = vadd.f32 %v1152, 0.0001
        %v1161 = vadd.f32 %v1153, 0.0001
        %v1162 = vadd.f32 %v1154, 0.0001
        %v1163 = vadd.f32 %v1155, 0.0001
        %v1164 = vadd.f32 %v1084, %v1092
        %v1165 = vadd.f32 %v1085, %v1093
        %v1166 = vadd.f32 %v1086, %v1094
        %v1167 = vadd.f32 %v1087, %v1095
        %v1168 = vadd.f32 %v1088, %v1096
        %v1169 = vadd.f32 %v1089, %v1097
        %v1170 = vadd.f32 %v1090, %v1098
        %v1171 = vadd.f32 %v1091, %v1099
        %v1172 = vadd.f32 %v1164, 0.0009
        %v1173 = vadd.f32 %v1165, 0.0009
        %v1174 = vadd.f32 %v1166, 0.0009
        %v1175 = vadd.f32 %v1167, 0.0009
        %v1176 = vadd.f32 %v1168, 0.0009
        %v1177 = vadd.f32 %v1169, 0.0009
        %v1178 = vadd.f32 %v1170, 0.0009
        %v1179 = vadd.f32 %v1171, 0.0009
        %v1180 = vmul.f32 %v1156, %v1172
        %v1181 = vmul.f32 %v1157, %v1173
        %v1182 = vmul.f32 %v1158, %v1174
        %v1183 = vmul.f32 %v1159, %v1175
        %v1184 = vmul.f32 %v1160, %v1176
        %v1185 = vmul.f32 %v1161, %v1177
        %v1186 = vmul.f32 %v1162, %v1178
        %v1187 = vmul.f32 %v1163, %v1179
        %v1188 = vrcp.pop %v1180
        %v1189 = vrcp.pop %v1181
        %v1190 = vrcp.pop %v1182
        %v1191 = vrcp.pop %v1183
        %v1192 = vrcp.pop %v1184
        %v1193 = vrcp.pop %v1185
        %v1194 = vrcp.pop %v1186
        %v1195 = vrcp.pop %v1187
        %v1196 = vmul.f32 %v1180, %v1188
        %v1197 = vmul.f32 %v1181, %v1189
        %v1198 = vmul.f32 %v1182, %v1190
        %v1199 = vmul.f32 %v1183, %v1191
        %v1200 = vmul.f32 %v1184, %v1192
        %v1201 = vmul.f32 %v1185, %v1193
        %v1202 = vmul.f32 %v1186, %v1194
        %v1203 = vmul.f32 %v1187, %v1195
        %v1204 = vsub.f32 2.0, %v1196
        %v1205 = vsub.f32 2.0, %v1197
        %v1206 = vsub.f32 2.0, %v1198
        %v1207 = vsub.f32 2.0, %v1199
        %v1208 = vsub.f32 2.0, %v1200
        %v1209 = vsub.f32 2.0, %v1201
        %v1210 = vsub.f32 2.0, %v1202
        %v1211 = vsub.f32 2.0, %v1203
        %v1212 = vmul.f32 %v1188, %v1204
        %v1213 = vmul.f32 %v1189, %v1205
        %v1214 = vmul.f32 %v1190, %v1206
        %v1215 = vmul.f32 %v1191, %v1207
        %v1216 = vmul.f32 %v1192, %v1208
        %v1217 = vmul.f32 %v1193, %v1209
        %v1218 = vmul.f32 %v1194, %v1210
        %v1219 = vmul.f32 %v1195, %v1211
        %v1220 = vmul.f32 %v1140, %v1212
        %v1221 = vmul.f32 %v1141, %v1213
        %v1222 = vmul.f32 %v1142, %v1214
        %v1223 = vmul.f32 %v1143, %v1215
        %v1224 = vmul.f32 %v1144, %v1216
        %v1225 = vmul.f32 %v1145, %v1217
        %v1226 = vmul.f32 %v1146, %v1218
        %v1227 = vmul.f32 %v1147, %v1219
        %v1228 = vsel %vm334, %v1220, 0.0
        %v1229 = vsel %vm334, %v1221, 0.0
        %v1230 = vadd.f32 %v1228, %v1229
        %v1231 = vsel %vm334, %v1222, 0.0
        %v1232 = vadd.f32 %v1230, %v1231
        %v1233 = vsel %vm334, %v1223, 0.0
        %v1234 = vadd.f32 %v1232, %v1233
        %v1235 = vsel %vm334, %v1224, 0.0
        %v1236 = vadd.f32 %v1234, %v1235
        %v1237 = vsel %vm334, %v1225, 0.0
        %v1238 = vadd.f32 %v1236, %v1237
        %v1239 = vsel %vm334, %v1226, 0.0
        %v1240 = vadd.f32 %v1238, %v1239
        %v1241 = vsel %vm334, %v1227, 0.0
        %v1242 = vadd.f32 %v1240, %v1241
        %1243 = vadd.xlane.f32.xlu0 %v1242
        %v1244 = vpop.xlane.xlu0 %1243
        %v1245 = vrot.slane %v1244, 4
        %v1246 = vadd.f32 %v1244, %v1245
        %v1247 = vrot.slane %v1246, 2
        %v1248 = vadd.f32 %v1246, %v1247
        %v1249 = vrot.slane %v1248, 1
        %v1250 = vadd.f32 %v1248, %v1249
        %s1251 = vtos %v1250
        %v1252 = vstv %s1251
        %1253 = vst [vmem:[%s289] sm:$0xff] %v1252
        %s1254 = sand.u32 %s122, 1
        %s1255 = scalar_lea.sflag [#allocation4], %s1254
        %s1256 = sand.u32 %s122, 1
        %s1257 = smul.addr %s1256, 8
        %s1258 = scalar_lea.vmem [#allocation9], %s1257
        // Predicated region
        $region53: #{tpu_custom_call.1} parent=35 // pred_check
          %p1259 = pneg %p132
        $region54: #{tpu_custom_call.1} parent=35 // pred_check_branch
          %1261 = sbr.rel (%p1259) target = $region56
        $region55: #{tpu_custom_call.1} parent=35 // pred_region
          %1263 = vsyncadd %s1255, 0
          %s1264 = smul.addr %s20, 8
          %s1265 = scalar_lea.hbm %s4, %s1264
          %s1267 = sshll.u32 %s1258, 4
          %s1268 = int_to_ptr.vmem [resolvable:$true] %s1267
          %s1269 = sshll.u32 %s1265, 4
          %s1270 = int_to_ptr.hbm [resolvable:$true] %s1269
          %1272 = dma.vmem_to_hbm [thread:$0]  %s1268, 128, %s1270, %s1255
        $region56: #{tpu_custom_call.1} parent=35 // pred_fallthru
          _
      $region36: #{tpu_custom_call.1} parent=5 // pred_fallthru
        _
      %p1273 = scmp.le.s32.totalorder 2, %s15
      // Predicated region
      $region57: #{tpu_custom_call.1} parent=5 // pred_check
        %p1274 = pneg %p1273
      $region58: #{tpu_custom_call.1} parent=5 // pred_check_branch
        %1276 = sbr.rel (%p1274) target = $region60
      $region59: #{tpu_custom_call.1} parent=5 // pred_region
        %s1277 = ssub.s32 %s15, 2
        // Predicated region
        $region61: #{tpu_custom_call.1} parent=59 // pred_check
          %p1278 = pneg %p138
        $region62: #{tpu_custom_call.1} parent=59 // pred_check_branch
          %1280 = sbr.rel (%p1278) target = $region64
        $region63: #{tpu_custom_call.1} parent=59 // pred_region
          %s1281 = sand.u32 %s123, 1
          %s1282 = scalar_lea.sflag [#allocation4], %s1281
          %s1283 = sand.u32 %s123, 1
          %s1284 = smul.addr %s1283, 8
          %s1285 = scalar_lea.vmem [#allocation9], %s1284
          %1287 = dma.done %s1282, 128
        $region64: #{tpu_custom_call.1} parent=59 // pred_fallthru
          _
      $region60: #{tpu_custom_call.1} parent=5 // pred_fallthru
        _
    $region6: #{tpu_custom_call.1} parent=1 // loop_footer
      %s19 = sadd.s32 1, %s15
    $region7: #{tpu_custom_call.1} parent=1 // loop_footer_branch
      %14 = sbr.rel target = $region3
    $region8: #{tpu_custom_call.1} parent=1 // loop_exit
      _
    %1288 = vsyncpa [#allocation3], 1
    %s1289 = scalar_lea.sflag [#allocation3], 1
    %1290 = vsyncpa %s1289, 1
    %1291 = vsyncpa [#allocation6], 1
    %1292 = vsyncpa [#allocation4], 1
    %s1293 = scalar_lea.sflag [#allocation4], 1
    %1294 = vsyncpa %s1293, 1

</llo_original>
